<compile_context>
chip_gen: v7x
topology: tpu7x:2x2x1
jax: 0.10.0
libtpu: 0.0.40
codegen_flags: <defaults>
</compile_context>

<pallas_src>
import functools

import jax
import jax.numpy as jnp
from jax.experimental import pallas as pl
from jax.experimental.pallas import tpu as pltpu

_LANE = 128


def _cdiv(a, b):
    return -(-a // b)


def _vmem_params(vmem_budget_bytes):
    """Chip-aware (budget for tiles, scoped VMEM limit) in bytes."""
    kind = ""
    try:
        kind = jax.devices()[0].device_kind.lower()
    except Exception:  # pragma: no cover - defensive
        pass
    if "v7" in kind:
        budget, limit = 10 * 2 ** 20, 32 * 2 ** 20   # 64 MiB VMEM per TC -> stay conservative
    else:
        budget, limit = 20 * 2 ** 20, 64 * 2 ** 20   # v5e/v6e: 128 MiB physical VMEM
    if vmem_budget_bytes is not None:
        budget = int(vmem_budget_bytes)
    return budget, limit


def _choose_tiling(b, d, in_itemsize, use_sigma, max_tile_d, vmem_budget_bytes, n_par):
    """Pick the feature tile width (columns) and grid split.

    Per-column VMEM cost of one grid step:
      2 inputs x 2 pipeline buffers x B x itemsize        (BlockSpec double buffer)
    + f32 working set of the kernel body (~3 x B x 4 for the sigma path, else ~1)
    + output accumulator block double buffer (2 x 4 bytes)
    Returns (td, n_inner, n_tiles) with n_tiles = number of real feature tiles.
    """
    d_groups = _cdiv(d, _LANE)
    f32_tmps = 3 if use_sigma else 1
    bytes_per_col = 2 * 2 * b * in_itemsize + f32_tmps * b * 4 + 2 * 4
    budget_groups = max(1, vmem_budget_bytes // (bytes_per_col * _LANE))
    cap_groups = max(1, min(budget_groups, max(1, max_tile_d // _LANE)))

    # Aim for >= ~4 inner steps per parallel block (pipelining), but keep tiles
    # lane-dense (>= 512 columns) whenever D is large enough.
    per_core_groups = max(1, _cdiv(d_groups, n_par))
    target_groups = max(4, _cdiv(per_core_groups, 4))
    td_groups = max(1, min(cap_groups, target_groups, per_core_groups))

    td = td_groups * _LANE
    n_tiles = _cdiv(d_groups, td_groups)          # real tiles needed to cover D
    n_inner = _cdiv(n_tiles, n_par)               # inner ("arbitrary") steps per block
    return td, n_inner, n_tiles


def _d2g_kernel(fake_ref, real_ref, out_ref, *, mu_eff, sigma_eff, use_mu, use_sigma,
                d_valid, td, n_inner):
    """One grid step processes a (B, TD) feature tile of both inputs.

    out_ref: (1, 1, TD) f32 block, resident across the inner grid axis; accumulates
    the weighted per-feature squared differences of the batch statistics.  Columns
    whose global index is >= d_valid (ragged tail of the last tile, or duplicated
    clamped tiles) are masked to zero inside the kernel - no wrapper-side padding.
    """
    p = pl.program_id(0)
    j = pl.program_id(1)

    @pl.when(j == 0)
    def _init():
        out_ref[...] = jnp.zeros_like(out_ref)

    fake = fake_ref[...].astype(jnp.float32)   # (B, TD)
    real = real_ref[...].astype(jnp.float32)   # (B, TD)

    # Per-feature batch means (needed for both terms).
    mu_f = jnp.mean(fake, axis=0, keepdims=True)   # (1, TD)
    mu_r = jnp.mean(real, axis=0, keepdims=True)   # (1, TD)

    contrib = jnp.zeros((1, td), jnp.float32)
    if use_mu:
        dmu = mu_f - mu_r
        contrib = contrib + mu_eff * (dmu * dmu)
    if use_sigma:
        # Two-pass centered std: matches the PyTorch reference numerics exactly.
        sig_f = jnp.sqrt(jnp.mean((fake - mu_f) ** 2, axis=0, keepdims=True))
        sig_r = jnp.sqrt(jnp.mean((real - mu_r) ** 2, axis=0, keepdims=True))
        dsig = sig_f - sig_r
        contrib = contrib + sigma_eff * (dsig * dsig)

    # Mask ragged / duplicated tail columns: global column index >= D contributes 0.
    col0 = (p * n_inner + j) * td
    cols = col0 + jax.lax.broadcasted_iota(jnp.int32, (1, td), 1)
    contrib = jnp.where(cols < d_valid, contrib, 0.0)

    out_ref[...] += contrib[None]                      # (1, 1, TD)


def _d2g_forward(fake2d, real2d, mu_eff, sigma_eff, use_mu, use_sigma,
                 max_tile_d, vmem_budget_bytes):
    """Pallas forward pass on flattened (B, D) features."""
    b, d = fake2d.shape

    # Only tiny D (< one lane group) needs a wrapper pad, and only up to 128 columns.
    if d < _LANE:
        pad = [(0, 0), (0, _LANE - d)]
        fake2d = jnp.pad(fake2d, pad)
        real2d = jnp.pad(real2d, pad)

    in_itemsize = jnp.dtype(fake2d.dtype).itemsize
    vmem_budget_bytes, vmem_limit_bytes = _vmem_params(vmem_budget_bytes)

    # Split the feature axis 2-ways whenever possible: feeds both TensorCores on
    # v7x; on single-TC v5e/v6e this is just a sequential 2-iteration outer axis.
    n_par = 2 if _cdiv(d, _LANE) >= 2 else 1
    td, n_inner, n_tiles = _choose_tiling(
        b, d, in_itemsize, use_sigma, max_tile_d, vmem_budget_bytes, n_par)

    kernel = functools.partial(
        _d2g_kernel, mu_eff=mu_eff, sigma_eff=sigma_eff,
        use_mu=use_mu, use_sigma=use_sigma,
        d_valid=d, td=td, n_inner=n_inner)

    def feat_map(p, j):
        # Clamp so an over-rounded (p, j) never addresses a fully out-of-bounds
        # block; its contribution is zeroed by the in-kernel column mask anyway.
        return (0, jnp.minimum(p * n_inner + j, n_tiles - 1))

    partials = pl.pallas_call(
        kernel,
        out_shape=jax.ShapeDtypeStruct((n_par, 1, td), jnp.float32),
        grid=(n_par, n_inner),
        in_specs=[
            pl.BlockSpec((b, td), feat_map),
            pl.BlockSpec((b, td), feat_map),
        ],
        out_specs=pl.BlockSpec((1, 1, td), lambda p, j: (p, 0, 0)),
        compiler_params=pltpu.CompilerParams(
            dimension_semantics=("parallel", "arbitrary"),
            vmem_limit_bytes=vmem_limit_bytes,
        ),
    )(fake2d, real2d)

    # Tiny epilogue: one cross-lane reduce + mean normalization over the original D.
    return jnp.sum(partials) / jnp.float32(d)


def _d2g_ref_2d(fake2d, real2d, mu_eff, sigma_eff, use_mu, use_sigma):
    """Pure-JAX statistics on flattened features (used for the backward pass)."""
    fake = fake2d.astype(jnp.float32)
    real = real2d.astype(jnp.float32)
    loss = jnp.float32(0.0)
    if use_mu:
        dmu = fake.mean(axis=0) - real.mean(axis=0)
        loss = loss + mu_eff * jnp.mean(dmu * dmu)
    if use_sigma:
        sig_f = jnp.sqrt(((fake - fake.mean(axis=0, keepdims=True)) ** 2).mean(axis=0))
        sig_r = jnp.sqrt(((real - real.mean(axis=0, keepdims=True)) ** 2).mean(axis=0))
        loss = loss + sigma_eff * jnp.mean((sig_f - sig_r) ** 2)
    return loss


@functools.partial(jax.custom_vjp, nondiff_argnums=(2, 3, 4, 5, 6, 7))
def _d2g_core(fake2d, real2d, mu_eff, sigma_eff, use_mu, use_sigma,
              max_tile_d, vmem_budget_bytes):
    return _d2g_forward(fake2d, real2d, mu_eff, sigma_eff, use_mu, use_sigma,
                        max_tile_d, vmem_budget_bytes)


def _d2g_core_fwd(fake2d, real2d, mu_eff, sigma_eff, use_mu, use_sigma,
                  max_tile_d, vmem_budget_bytes):
    out = _d2g_forward(fake2d, real2d, mu_eff, sigma_eff, use_mu, use_sigma,
                       max_tile_d, vmem_budget_bytes)
    return out, (fake2d, real2d)


def _d2g_core_bwd(mu_eff, sigma_eff, use_mu, use_sigma, max_tile_d, vmem_budget_bytes,
                  res, g):
    # Backward is analytically simple; compute it as the exact VJP of the plain-JAX
    # statistics (same formula as the PyTorch reference) - correctness by construction.
    # TODO(synk): like PyTorch, sqrt(0) for zero-variance feature columns yields
    # NaN gradients; a fused Pallas backward could mask those columns explicitly.
    fake2d, real2d = res
    _, vjp_fn = jax.vjp(
        lambda f, r: _d2g_ref_2d(f, r, mu_eff, sigma_eff, use_mu, use_sigma),
        fake2d, real2d)
    d_fake, d_real = vjp_fn(g)
    return d_fake, d_real


_d2g_core.defvjp(_d2g_core_fwd, _d2g_core_bwd)


def d2g_loss(feat_fake, feat_real, cfg, *, max_tile_d=4096, vmem_budget_bytes=None):
    """Pallas implementation of D2GLoss.forward (differentiable via custom VJP).

    feat_fake / feat_real: arrays of identical shape (B, ...); trailing dims are
    flattened to one feature axis.  cfg: dict possibly containing 'mu' / 'sigma'
    weights (floats).
    """
    assert feat_fake.shape == feat_real.shape
    b = feat_fake.shape[0]
    fake2d = feat_fake.reshape(b, -1)
    real2d = feat_real.reshape(b, -1)
    d = fake2d.shape[1]

    use_mu = 'mu' in cfg
    use_sigma = 'sigma' in cfg
    if not (use_mu or use_sigma) or d == 0:
        return jnp.float32(0.0)

    mu_eff = float(cfg.get('mu', 0.0))
    sigma_eff = float(cfg.get('sigma', 0.0))

    return _d2g_core(fake2d, real2d, mu_eff, sigma_eff, use_mu, use_sigma,
                     int(max_tile_d), vmem_budget_bytes)


def d2g_loss_ref(feat_fake, feat_real, cfg):
    """Pure-JAX reference matching the PyTorch module exactly."""
    b = feat_fake.shape[0]
    fake = feat_fake.reshape(b, -1).astype(jnp.float32)
    real = feat_real.reshape(b, -1).astype(jnp.float32)
    loss = jnp.float32(0.0)
    if 'mu' in cfg:
        mu_f = fake.mean(axis=0)
        mu_r = real.mean(axis=0)
        loss = loss + cfg['mu'] * jnp.mean((mu_f - mu_r) ** 2)
    if 'sigma' in cfg:
        sig_f = jnp.sqrt(((fake - fake.mean(axis=0, keepdims=True)) ** 2).mean(axis=0))
        sig_r = jnp.sqrt(((real - real.mean(axis=0, keepdims=True)) ** 2).mean(axis=0))
        loss = loss + cfg['sigma'] * jnp.mean((sig_f - sig_r) ** 2)
    return loss


if __name__ == "__main__":
    key = jax.random.PRNGKey(0)
    k1, k2, k3, k4 = jax.random.split(key, 4)

    # Small conv-style discriminator features: (B, C, H, W) = (8, 4, 8, 8) -> D = 256.
    feat_fake = jax.random.normal(k1, (8, 4, 8, 8), dtype=jnp.float32)
    feat_real = jax.random.normal(k2, (8, 4, 8, 8), dtype=jnp.float32) * 1.3 + 0.2

    for cfg in ({'mu': 1.0, 'sigma': 0.5}, {'mu': 2.0}, {'sigma': 1.5}):
        got = jax.block_until_ready(d2g_loss(feat_fake, feat_real, cfg))
        ref = jax.block_until_ready(d2g_loss_ref(feat_fake, feat_real, cfg))
        assert jnp.allclose(got, ref, rtol=1e-5, atol=1e-6), (cfg, got, ref)

    # D = 1200 (not a multiple of 128): exercises the in-kernel ragged-tail mask,
    # multi-tile accumulation and the 2-way parallel outer grid axis.
    ff2 = jax.random.normal(k3, (8, 3, 20, 20), dtype=jnp.float32)
    fr2 = jax.random.normal(k4, (8, 3, 20, 20), dtype=jnp.float32) * 0.7 - 0.1
    cfg = {'mu': 1.0, 'sigma': 0.5}
    ref = jax.block_until_ready(d2g_loss_ref(ff2, fr2, cfg))
    got = jax.block_until_ready(d2g_loss(ff2, fr2, cfg, max_tile_d=256))  # forced small tiles
    assert jnp.allclose(got, ref, rtol=1e-5, atol=1e-6), (got, ref)
    got = jax.block_until_ready(d2g_loss(ff2, fr2, cfg))                  # default tiling
    assert jnp.allclose(got, ref, rtol=1e-5, atol=1e-6), (got, ref)

    # D2GLoss is a training loss: jax.grad must work (custom VJP, plain-JAX backward).
    g_fake, g_real = jax.grad(lambda a, b: d2g_loss(a, b, cfg), argnums=(0, 1))(ff2, fr2)
    rg_fake, rg_real = jax.grad(lambda a, b: d2g_loss_ref(a, b, cfg), argnums=(0, 1))(ff2, fr2)
    jax.block_until_ready((g_fake, g_real))
    assert jnp.allclose(g_fake, rg_fake, rtol=1e-5, atol=1e-6)
    assert jnp.allclose(g_real, rg_real, rtol=1e-5, atol=1e-6)

    print("KERNEL_OK")
</pallas_src>

<mosaic_0001>
module attributes {stable_mosaic.version = 11 : i64} {
  func.func @_d2g_kernel(%arg0: i32, %arg1: i32, %arg2: memref<8x128xf32, #tpu.memory_space<vmem>>, %arg3: memref<8x128xf32, #tpu.memory_space<vmem>>, %arg4: memref<1x1x128xf32, #tpu.memory_space<vmem>>) attributes {dimension_semantics = [#tpu.dimension_semantics<parallel>, #tpu.dimension_semantics<arbitrary>], iteration_bounds = array<i64: 2, 1>, scalar_prefetch = 0 : i64, scratch_operands = 0 : i64, tpu.core_type = #tpu.core_type<tc>, window_params = [{transform_indices = @transform_0, window_bounds = array<i64: 8, 128>}, {transform_indices = @transform_1, window_bounds = array<i64: 8, 128>}, {transform_indices = @transform_2, window_bounds = array<i64: 1, 1, 128>}]} {
    %c0_i32 = arith.constant 0 : i32
    %0 = arith.cmpi eq, %arg1, %c0_i32 : i32
    %1 = arith.extui %0 : i1 to i32
    %c0_i32_0 = arith.constant 0 : i32
    %2 = arith.cmpi ne, %1, %c0_i32_0 : i32
    scf.if %2 {
      %cst_21 = arith.constant 0.000000e+00 : f32
      %54 = vector.broadcast %cst_21 : f32 to vector<1x1x128xf32>
      %c0_22 = arith.constant 0 : index
      %c0_23 = arith.constant 0 : index
      %c0_24 = arith.constant 0 : index
      %55 = vector.load %arg4[%c0_22, %c0_23, %c0_24] : memref<1x1x128xf32, #tpu.memory_space<vmem>>, vector<1x1x128xf32>
      tpu.vector_store %arg4[%c0_22, %c0_23, %c0_24], %54 {strides = array<i32>} : memref<1x1x128xf32, #tpu.memory_space<vmem>>, vector<1x1x128xf32>,
    } else {
    }
    %c0 = arith.constant 0 : index
    %c0_1 = arith.constant 0 : index
    %3 = vector.load %arg2[%c0, %c0_1] : memref<8x128xf32, #tpu.memory_space<vmem>>, vector<8x128xf32>
    %c0_2 = arith.constant 0 : index
    %c0_3 = arith.constant 0 : index
    %4 = vector.load %arg3[%c0_2, %c0_3] : memref<8x128xf32, #tpu.memory_space<vmem>>, vector<8x128xf32>
    %cst = arith.constant dense<0.000000e+00> : vector<128xf32>
    %5 = vector.multi_reduction <add>, %3, %cst [0] : vector<8x128xf32> to vector<128xf32>
    %6 = vector.shape_cast %5 : vector<128xf32> to vector<1x128xf32>
    %cst_4 = arith.constant 8.000000e+00 : f32
    %7 = vector.broadcast %cst_4 : f32 to vector<1x128xf32>
    %8 = arith.divf %6, %7 : vector<1x128xf32>
    %cst_5 = arith.constant dense<0.000000e+00> : vector<128xf32>
    %9 = vector.multi_reduction <add>, %4, %cst_5 [0] : vector<8x128xf32> to vector<128xf32>
    %10 = vector.shape_cast %9 : vector<128xf32> to vector<1x128xf32>
    %cst_6 = arith.constant 8.000000e+00 : f32
    %11 = vector.broadcast %cst_6 : f32 to vector<1x128xf32>
    %12 = arith.divf %10, %11 : vector<1x128xf32>
    %cst_7 = arith.constant 0.000000e+00 : f32
    %13 = vector.broadcast %cst_7 : f32 to vector<1x128xf32>
    %14 = arith.subf %8, %12 : vector<1x128xf32>
    %15 = arith.mulf %14, %14 : vector<1x128xf32>
    %cst_8 = arith.constant 1.000000e+00 : f32
    %16 = vector.broadcast %cst_8 : f32 to vector<1x128xf32>
    %17 = arith.mulf %16, %15 : vector<1x128xf32>
    %18 = arith.addf %13, %17 : vector<1x128xf32>
    %19 = vector.broadcast %8 : vector<1x128xf32> to vector<8x128xf32>
    %20 = arith.subf %3, %19 : vector<8x128xf32>
    %21 = arith.mulf %20, %20 : vector<8x128xf32>
    %cst_9 = arith.constant dense<0.000000e+00> : vector<128xf32>
    %22 = vector.multi_reduction <add>, %21, %cst_9 [0] : vector<8x128xf32> to vector<128xf32>
    %23 = vector.shape_cast %22 : vector<128xf32> to vector<1x128xf32>
    %cst_10 = arith.constant 8.000000e+00 : f32
    %24 = vector.broadcast %cst_10 : f32 to vector<1x128xf32>
    %25 = arith.divf %23, %24 : vector<1x128xf32>
    %26 = math.sqrt %25 : vector<1x128xf32>
    %27 = vector.broadcast %12 : vector<1x128xf32> to vector<8x128xf32>
    %28 = arith.subf %4, %27 : vector<8x128xf32>
    %29 = arith.mulf %28, %28 : vector<8x128xf32>
    %cst_11 = arith.constant dense<0.000000e+00> : vector<128xf32>
    %30 = vector.multi_reduction <add>, %29, %cst_11 [0] : vector<8x128xf32> to vector<128xf32>
    %31 = vector.shape_cast %30 : vector<128xf32> to vector<1x128xf32>
    %cst_12 = arith.constant 8.000000e+00 : f32
    %32 = vector.broadcast %cst_12 : f32 to vector<1x128xf32>
    %33 = arith.divf %31, %32 : vector<1x128xf32>
    %34 = math.sqrt %33 : vector<1x128xf32>
    %35 = arith.subf %26, %34 : vector<1x128xf32>
    %36 = arith.mulf %35, %35 : vector<1x128xf32>
    %cst_13 = arith.constant 5.000000e-01 : f32
    %37 = vector.broadcast %cst_13 : f32 to vector<1x128xf32>
    %38 = arith.mulf %37, %36 : vector<1x128xf32>
    %39 = arith.addf %18, %38 : vector<1x128xf32>
    %c1_i32 = arith.constant 1 : i32
    %40 = arith.muli %arg0, %c1_i32 : i32
    %41 = arith.addi %40, %arg1 : i32
    %c128_i32 = arith.constant 128 : i32
    %42 = arith.muli %41, %c128_i32 : i32
    %43 = tpu.iota {dimensions = array<i32: 1>} : vector<1x128xi32>
    %44 = vector.broadcast %42 : i32 to vector<1x128xi32>
    %45 = arith.addi %44, %43 : vector<1x128xi32>
    %c256_i32 = arith.constant 256 : i32
    %46 = vector.broadcast %c256_i32 : i32 to vector<1x128xi32>
    %47 = arith.cmpi slt, %45, %46 : vector<1x128xi32>
    %cst_14 = arith.constant 0.000000e+00 : f32
    %48 = vector.broadcast %cst_14 : f32 to vector<1x128xf32>
    %49 = arith.select %47, %39, %48 : vector<1x128xi1>, vector<1x128xf32>
    %c0_15 = arith.constant 0 : index
    %c0_16 = arith.constant 0 : index
    %c0_17 = arith.constant 0 : index
    %50 = vector.load %arg4[%c0_15, %c0_16, %c0_17] : memref<1x1x128xf32, #tpu.memory_space<vmem>>, vector<1x1x128xf32>
    %51 = vector.shape_cast %49 : vector<1x128xf32> to vector<1x1x128xf32>
    %52 = arith.addf %50, %51 : vector<1x1x128xf32>
    %c0_18 = arith.constant 0 : index
    %c0_19 = arith.constant 0 : index
    %c0_20 = arith.constant 0 : index
    %53 = vector.load %arg4[%c0_18, %c0_19, %c0_20] : memref<1x1x128xf32, #tpu.memory_space<vmem>>, vector<1x1x128xf32>
    tpu.vector_store %arg4[%c0_18, %c0_19, %c0_20], %52 {strides = array<i32>} : memref<1x1x128xf32, #tpu.memory_space<vmem>>, vector<1x1x128xf32>,
    return
  }
  func.func @transform_0(%arg0: i32, %arg1: i32) -> (i32, i32) {
    %c1_i32 = arith.constant 1 : i32
    %0 = arith.muli %arg0, %c1_i32 : i32
    %1 = arith.addi %0, %arg1 : i32
    %c1_i32_0 = arith.constant 1 : i32
    %2 = arith.minsi %1, %c1_i32_0 : i32
    %c0_i32 = arith.constant 0 : i32
    %c0_i32_1 = arith.constant 0 : i32
    return %c0_i32, %2 : i32, i32
  }
  func.func @transform_1(%arg0: i32, %arg1: i32) -> (i32, i32) {
    %c1_i32 = arith.constant 1 : i32
    %0 = arith.muli %arg0, %c1_i32 : i32
    %1 = arith.addi %0, %arg1 : i32
    %c1_i32_0 = arith.constant 1 : i32
    %2 = arith.minsi %1, %c1_i32_0 : i32
    %c0_i32 = arith.constant 0 : i32
    %c0_i32_1 = arith.constant 0 : i32
    return %c0_i32, %2 : i32, i32
  }
  func.func @transform_2(%arg0: i32, %arg1: i32) -> (i32, i32, i32) {
    %c0_i32 = arith.constant 0 : i32
    %c0_i32_0 = arith.constant 0 : i32
    %c0_i32_1 = arith.constant 0 : i32
    return %arg0, %c0_i32, %c0_i32_0 : i32, i32, i32
  }
}

</mosaic_0001>

<llo_original>
// kernel: tpu_custom_call.1
$region0: #{tpu_custom_call.1}
  #allocation0 [shape = 'u32[]', space=smem, size = 0x4, offset = 0x4, fixed_abs, tag = 'smem constant byte address 0x4 - core index']
  #allocation1 [shape = 'u32[144,128]{1,0:T(1,128)}', space=vmem, size = 0x12000, scoped, tag = 'internal scratch']
  %s0 = inlined_call_operand.hbm [shape: f32[8,256], index: 0, kind: input, shape index: {}]
  %s1 = inlined_call_operand.hbm [shape: f32[8,256], index: 1, kind: input, shape index: {}]
  %s2 = inlined_call_operand.hbm [shape: f32[2,1,128], index: 2, kind: output, shape index: {}]
  %s3 = sld [smem:[#allocation0]]
  $region53: #{tpu_custom_call.1} parent=0
    _
  %s5 = ssub.s32 1, %s3
  %s6 = scalar_select 0, %s5, %s3
  $region1: #{tpu_custom_call.1} parent=0
    #allocation2 [shape = 'u8[8192]{0}', space=vmem, size = 0x2000, scoped, tag = 'input window, operand 0']
    #allocation3 [shape = 's32[2]{0}', space=sflag, size = 0x8, scoped, tag = 'scoped memory for tpu_custom_call.1']
    #allocation4 [shape = 's32[2]{0}', space=sflag, size = 0x8, scoped, tag = 'scoped memory for tpu_custom_call.1']
    #allocation5 [shape = 'u8[8192]{0}', space=vmem, size = 0x2000, scoped, tag = 'input window, operand 1']
    #allocation6 [shape = 's32[2]{0}', space=sflag, size = 0x8, scoped, tag = 'scoped memory for tpu_custom_call.1']
    #allocation7 [shape = 'u8[1024]{0}', space=vmem, size = 0x400, scoped, tag = 'output window, operand 0']
    %7 = vsyncpa [#allocation3], 0
    %s8 = scalar_lea.sflag [#allocation3], 1
    %9 = vsyncpa %s8, 0
    %10 = vsyncpa [#allocation6], 0
    %s11 = scalar_lea.sflag [#allocation6], 1
    %12 = vsyncpa %s11, 0
    %13 = vsyncpa [#allocation4], 0
    %s14 = scalar_lea.sflag [#allocation4], 1
    %15 = vsyncpa %s14, 0
    loop: start=0, step=1, limit=4
    $region2: #{tpu_custom_call.1} parent=1 // loop_pre_header
      _
    $region3: #{tpu_custom_call.1} parent=1 // loop_header
      %s17 = sphi 0, %s21
      %p18 = scmp.ge.s32.totalorder %s17, 4
      %s24 = sphi 0, %s36
      %s25 = sphi 0, %s32
      %s26 = sphi 0, %s24
      %s27 = sphi 0, %s25
      %s28 = sphi 0, %s26
      %s29 = sphi 0, %s27
      %s45 = sphi 0, %s47
      %s48 = sphi 0, %s45
      %s49 = sphi 0, %s48
      %s65 = sphi 0, %s49
      %s77 = sphi 0, %s79
      %s80 = sphi 0, %s77
      %s81 = sphi 0, %s80
      %s97 = sphi 0, %s81
      %s103 = sphi 0, %s105
      %s106 = sphi 0, %s103
      %s107 = sphi 0, %s106
      %s123 = sphi 0, %s107
    $region4: #{tpu_custom_call.1} parent=1 // loop_header_branch
      %20 = sbr.rel (%p18) target = $region8
    $region5: #{tpu_custom_call.1} parent=1 // loop_body
      %s22 = ssub.s32 %s17, 1
      %s23 = ssub.s32 %s17, 2
      %s30 = sadd.s32 1, %s25
      %p31 = scmp.ge.s32.totalorder %s30, 1
      %s32 = scalar_select %p31, 0, %s30
      %s33 = sadd.s32 1, %s24
      %s34 = scalar_select %p31, %s33, %s24
      %p35 = scmp.ge.s32.totalorder %s34, 2
      %s36 = scalar_select %p35, 0, %s34
      %s37 = sadd.s32 %s24, %s25
      %p38 = scmp.lt.s32.totalorder %s37, 1
      %s39 = scalar_select %p38, %s37, 1
      %s40 = sadd.s32 %s36, %s32
      %p41 = scmp.lt.s32.totalorder %s40, 1
      %s42 = scalar_select %p41, %s40, 1
      %s43 = ssub.s32 %s39, %s42
      %p44 = scmp.eq.s32.totalorder %s43, 0
      %s46 = sadd.s32 %s45, 1
      %s47 = scalar_select %p44, %s45, %s46
      %p50 = pneg %p44
      %p51 = scmp.eq.s32.totalorder %s17, 1
      %p52 = por %p50, %p51
      %p53 = scmp.ne.s32.totalorder %s45, %s48
      %p54 = scmp.eq.s32.totalorder %s17, 0
      %p55 = por %p53, %p54
      %p56 = scmp.ne.s32.totalorder %s45, %s48
      %p57 = scmp.eq.s32.totalorder %s22, 1
      %p58 = por %p56, %p57
      %p59 = scmp.ne.s32.totalorder %s48, %s49
      %p60 = scmp.eq.s32.totalorder %s22, 0
      %p61 = por %p59, %p60
      %p62 = scmp.ne.s32.totalorder %s48, %s49
      %p63 = scmp.eq.s32.totalorder %s23, 1
      %p64 = por %p62, %p63
      %p66 = scmp.ne.s32.totalorder %s49, %s65
      %p67 = scmp.eq.s32.totalorder %s23, 0
      %p68 = por %p66, %p67
      %s69 = sadd.s32 %s24, %s25
      %p70 = scmp.lt.s32.totalorder %s69, 1
      %s71 = scalar_select %p70, %s69, 1
      %s72 = sadd.s32 %s36, %s32
      %p73 = scmp.lt.s32.totalorder %s72, 1
      %s74 = scalar_select %p73, %s72, 1
      %s75 = ssub.s32 %s71, %s74
      %p76 = scmp.eq.s32.totalorder %s75, 0
      %s78 = sadd.s32 %s77, 1
      %s79 = scalar_select %p76, %s77, %s78
      %p82 = pneg %p76
      %p83 = scmp.eq.s32.totalorder %s17, 1
      %p84 = por %p82, %p83
      %p85 = scmp.ne.s32.totalorder %s77, %s80
      %p86 = scmp.eq.s32.totalorder %s17, 0
      %p87 = por %p85, %p86
      %p88 = scmp.ne.s32.totalorder %s77, %s80
      %p89 = scmp.eq.s32.totalorder %s22, 1
      %p90 = por %p88, %p89
      %p91 = scmp.ne.s32.totalorder %s80, %s81
      %p92 = scmp.eq.s32.totalorder %s22, 0
      %p93 = por %p91, %p92
      %p94 = scmp.ne.s32.totalorder %s80, %s81
      %p95 = scmp.eq.s32.totalorder %s23, 1
      %p96 = por %p94, %p95
      %p98 = scmp.ne.s32.totalorder %s81, %s97
      %p99 = scmp.eq.s32.totalorder %s23, 0
      %p100 = por %p98, %p99
      %s101 = ssub.s32 %s24, %s36
      %p102 = scmp.eq.s32.totalorder %s101, 0
      %s104 = sadd.s32 %s103, 1
      %s105 = scalar_select %p102, %s103, %s104
      %p108 = pneg %p102
      %p109 = scmp.eq.s32.totalorder %s17, 1
      %p110 = por %p108, %p109
      %p111 = scmp.ne.s32.totalorder %s103, %s106
      %p112 = scmp.eq.s32.totalorder %s17, 0
      %p113 = por %p111, %p112
      %p114 = scmp.ne.s32.totalorder %s103, %s106
      %p115 = scmp.eq.s32.totalorder %s22, 1
      %p116 = por %p114, %p115
      %p117 = scmp.ne.s32.totalorder %s106, %s107
      %p118 = scmp.eq.s32.totalorder %s22, 0
      %p119 = por %p117, %p118
      %p120 = scmp.ne.s32.totalorder %s106, %s107
      %p121 = scmp.eq.s32.totalorder %s23, 1
      %p122 = por %p120, %p121
      %p124 = scmp.ne.s32.totalorder %s107, %s123
      %p125 = scmp.eq.s32.totalorder %s23, 0
      %p126 = por %p124, %p125
      %p127 = scmp.le.s32.totalorder 1, %s17
      %p128 = scmp.lt.s32.totalorder %s17, 3
      %p129 = pnand %p127, %p128
      %p130 = pneg %p129
      // Predicated region
      $region9: #{tpu_custom_call.1} parent=5 // pred_check
        _
      $region10: #{tpu_custom_call.1} parent=5 // pred_check_branch
        %132 = sbr.rel (%p129) target = $region12
      $region11: #{tpu_custom_call.1} parent=5 // pred_region
        %s133 = ssub.s32 %s17, 1
      $region12: #{tpu_custom_call.1} parent=5 // pred_fallthru
        _
      %p134 = scmp.lt.s32.totalorder %s17, 2
      // Predicated region
      $region13: #{tpu_custom_call.1} parent=5 // pred_check
        %p135 = pneg %p134
      $region14: #{tpu_custom_call.1} parent=5 // pred_check_branch
        %137 = sbr.rel (%p135) target = $region16
      $region15: #{tpu_custom_call.1} parent=5 // pred_region
        // Predicated region
        $region17: #{tpu_custom_call.1} parent=15 // pred_check
          %p138 = pneg %p55
        $region18: #{tpu_custom_call.1} parent=15 // pred_check_branch
          %140 = sbr.rel (%p138) target = $region20
        $region19: #{tpu_custom_call.1} parent=15 // pred_region
          %s141 = sand.u32 %s45, 1
          %s142 = scalar_lea.sflag [#allocation3], %s141
          %s143 = sand.u32 %s45, 1
          %s144 = smul.addr %s143, 8
          %s145 = scalar_lea.vmem [#allocation2], %s144
          %s146 = sadd.s32 %s24, %s25
          %p147 = scmp.lt.s32.totalorder %s146, 1
          %s148 = scalar_select %p147, %s146, 1
          %s150 = ssub.s32 128, 128
          %151 = vsyncadd %s142, %s150
          %s152 = smul.addr %s148, 128
          %s153 = scalar_lea.hbm %s0, %s152
          %s155 = sshll.u32 %s145, 4
          %s156 = int_to_ptr.vmem [resolvable:$true] %s155
          %158 = dma.hbm_to_vmem [thread:$0]  %s153, 128, %s156, %s142
        $region20: #{tpu_custom_call.1} parent=15 // pred_fallthru
          _
        // Predicated region
        $region21: #{tpu_custom_call.1} parent=15 // pred_check
          %p159 = pneg %p87
        $region22: #{tpu_custom_call.1} parent=15 // pred_check_branch
          %161 = sbr.rel (%p159) target = $region24
        $region23: #{tpu_custom_call.1} parent=15 // pred_region
          %s162 = sand.u32 %s77, 1
          %s163 = scalar_lea.sflag [#allocation6], %s162
          %s164 = sand.u32 %s77, 1
          %s165 = smul.addr %s164, 8
          %s166 = scalar_lea.vmem [#allocation5], %s165
          %s167 = sadd.s32 %s24, %s25
          %p168 = scmp.lt.s32.totalorder %s167, 1
          %s169 = scalar_select %p168, %s167, 1
          %s171 = ssub.s32 128, 128
          %172 = vsyncadd %s163, %s171
          %s173 = smul.addr %s169, 128
          %s174 = scalar_lea.hbm %s1, %s173
          %s176 = sshll.u32 %s166, 4
          %s177 = int_to_ptr.vmem [resolvable:$true] %s176
          %179 = dma.hbm_to_vmem [thread:$0]  %s174, 128, %s177, %s163
        $region24: #{tpu_custom_call.1} parent=15 // pred_fallthru
          _
      $region16: #{tpu_custom_call.1} parent=5 // pred_fallthru
        _
      %p180 = scmp.le.s32.totalorder 1, %s17
      %p181 = scmp.lt.s32.totalorder %s17, 3
      %p182 = pnand %p180, %p181
      %p183 = pneg %p182
      // Predicated region
      $region25: #{tpu_custom_call.1} parent=5 // pred_check
        _
      $region26: #{tpu_custom_call.1} parent=5 // pred_check_branch
        %185 = sbr.rel (%p182) target = $region28
      $region27: #{tpu_custom_call.1} parent=5 // pred_region
        %s186 = ssub.s32 %s17, 1
        %s187 = sand.u32 %s48, 1
        %s188 = scalar_lea.sflag [#allocation3], %s187
        %s189 = sand.u32 %s48, 1
        %s190 = smul.addr %s189, 8
        %s191 = scalar_lea.vmem [#allocation2], %s190
        // Predicated region
        $region29: #{tpu_custom_call.1} parent=27 // pred_check
          %p192 = pneg %p61
        $region30: #{tpu_custom_call.1} parent=27 // pred_check_branch
          %194 = sbr.rel (%p192) target = $region32
        $region31: #{tpu_custom_call.1} parent=27 // pred_region
          %195 = dma.done %s188, 128
        $region32: #{tpu_custom_call.1} parent=27 // pred_fallthru
          _
        %s196 = sand.u32 %s80, 1
        %s197 = scalar_lea.sflag [#allocation6], %s196
        %s198 = sand.u32 %s80, 1
        %s199 = smul.addr %s198, 8
        %s200 = scalar_lea.vmem [#allocation5], %s199
        // Predicated region
        $region33: #{tpu_custom_call.1} parent=27 // pred_check
          %p201 = pneg %p93
        $region34: #{tpu_custom_call.1} parent=27 // pred_check_branch
          %203 = sbr.rel (%p201) target = $region36
        $region35: #{tpu_custom_call.1} parent=27 // pred_region
          %204 = dma.done %s197, 128
        $region36: #{tpu_custom_call.1} parent=27 // pred_fallthru
          _
        %s205 = sand.u32 %s48, 1
        %s206 = scalar_lea.sflag [#allocation3], %s205
        %s207 = sand.u32 %s48, 1
        %s208 = smul.addr %s207, 8
        %s209 = scalar_lea.vmem [#allocation2], %s208
        %p210 = pneg %p61
        %p211 = pneg %p58
        %s212 = sand.u32 %s80, 1
        %s213 = scalar_lea.sflag [#allocation6], %s212
        %s214 = sand.u32 %s80, 1
        %s215 = smul.addr %s214, 8
        %s216 = scalar_lea.vmem [#allocation5], %s215
        %p217 = pneg %p93
        %p218 = pneg %p90
        %p219 = pneg %p119
        %p220 = pneg %p116
        %s221 = sand.u32 %s106, 1
        %s222 = scalar_lea.sflag [#allocation4], %s221
        %s223 = sand.u32 %s106, 1
        %s224 = scalar_lea.vmem [#allocation7], %s223
        %s225 = sadd.s32 %s26, %s27
        %p226 = scmp.lt.s32.totalorder %s225, 1
        %s227 = scalar_select %p226, %s225, 1
        %s228 = sadd.s32 %s26, %s27
        %p229 = scmp.lt.s32.totalorder %s228, 1
        %s230 = scalar_select %p229, %s228, 1
        %p231 = scmp.eq.s32.totalorder %s27, 0
        // Predicated region
        $region37: #{tpu_custom_call.1} parent=27 // pred_check
          %p232 = pneg %p231
        $region38: #{tpu_custom_call.1} parent=27 // pred_check_branch
          %234 = sbr.rel (%p232) target = $region40
        $region39: #{tpu_custom_call.1} parent=27 // pred_region
          %235 = vst [vmem:[%s224] sm:$0x1] 0.0
        $region40: #{tpu_custom_call.1} parent=27 // pred_fallthru
          _
        %v236 = vld [vmem:[%s191] sm:$0xff]
        %v237 = vld [vmem:[%s200] sm:$0xff]
        %v238 = vrot.slane %v236, 4
        %v239 = vadd.f32 %v236, %v238
        %v240 = vrot.slane %v239, 2
        %v241 = vadd.f32 %v239, %v240
        %v242 = vrot.slane %v241, 1
        %v243 = vadd.f32 %v241, %v242
        %v244 = vrcp.pop 8.0
        %v245 = vmul.f32 %v243, %v244
        %v246 = vrot.slane %v237, 4
        %v247 = vadd.f32 %v237, %v246
        %v248 = vrot.slane %v247, 2
        %v249 = vadd.f32 %v247, %v248
        %v250 = vrot.slane %v249, 1
        %v251 = vadd.f32 %v249, %v250
        %v252 = vmul.f32 %v251, %v244
        %v253 = vsub.f32 %v245, %v252
        %v254 = vmul.f32 %v253, %v253
        %v255 = vadd.f32 %v254, 0.0
        %v256 = vsub.f32 %v236, %v245
        %v257 = vmul.f32 %v256, %v256
        %v258 = vrot.slane %v257, 4
        %v259 = vadd.f32 %v257, %v258
        %v260 = vrot.slane %v259, 2
        %v261 = vadd.f32 %v259, %v260
        %v262 = vrot.slane %v261, 1
        %v263 = vadd.f32 %v261, %v262
        %v264 = vmul.f32 %v263, %v244
        %v265 = vrsqrt.pop %v264
        %v266 = vmul.f32 %v264, %v265
        %vm267 = vcmp.eq.f32.partialorder %v264, inf
        %v268 = vsel %vm267, %v264, %v266
        %vm269 = vcmp.eq.f32.partialorder %v264, 0.0
        %v270 = vand.u32 %v264, 2147483648
        %v271 = vsel %vm269, %v270, %v268
        %v272 = vsub.f32 %v237, %v252
        %v273 = vmul.f32 %v272, %v272
        %v274 = vrot.slane %v273, 4
        %v275 = vadd.f32 %v273, %v274
        %v276 = vrot.slane %v275, 2
        %v277 = vadd.f32 %v275, %v276
        %v278 = vrot.slane %v277, 1
        %v279 = vadd.f32 %v277, %v278
        %v280 = vmul.f32 %v279, %v244
        %v281 = vrsqrt.pop %v280
        %v282 = vmul.f32 %v280, %v281
        %vm283 = vcmp.eq.f32.partialorder %v280, inf
        %v284 = vsel %vm283, %v280, %v282
        %vm285 = vcmp.eq.f32.partialorder %v280, 0.0
        %v286 = vand.u32 %v280, 2147483648
        %v287 = vsel %vm285, %v286, %v284
        %v288 = vsub.f32 %v271, %v287
        %v289 = vmul.f32 %v288, %v288
        %v290 = vmul.f32 %v289, 0.5
        %v291 = vadd.f32 %v255, %v290
        %s292 = sadd.s32 %s26, %s27
        %s293 = smul.u32 %s292, 128
        %v294 = vlaneseq
        %v295 = vand.u32 %v294, 127
        %v296 = vstv %s293
        %v297 = vadd.s32 %v296, %v295
        %vm298 = vcmp.lt.s32.totalorder %v297, 256
        %v299 = vsel %vm298, %v291, 0.0
        %v300 = vld [vmem:[%s224] sm:$0x1]
        %v301 = vadd.f32 %v300, %v299
        %302 = vst [vmem:[%s224] sm:$0x1] %v301
        %s303 = sand.u32 %s106, 1
        %s304 = scalar_lea.sflag [#allocation4], %s303
        %s305 = sand.u32 %s106, 1
        %s306 = scalar_lea.vmem [#allocation7], %s305
        // Predicated region
        $region41: #{tpu_custom_call.1} parent=27 // pred_check
          %p307 = pneg %p116
        $region42: #{tpu_custom_call.1} parent=27 // pred_check_branch
          %309 = sbr.rel (%p307) target = $region44
        $region43: #{tpu_custom_call.1} parent=27 // pred_region
          %s311 = ssub.s32 16, 16
          %312 = vsyncadd %s304, %s311
          %s313 = smul.addr %s26, 16
          %s314 = scalar_lea.hbm %s2, %s313
          %s316 = sshll.u32 %s306, 4
          %s317 = int_to_ptr.vmem [resolvable:$true] %s316
          %319 = dma.vmem_to_hbm [thread:$0]  %s317, 16, %s314, %s304
        $region44: #{tpu_custom_call.1} parent=27 // pred_fallthru
          _
      $region28: #{tpu_custom_call.1} parent=5 // pred_fallthru
        _
      %p320 = scmp.le.s32.totalorder 2, %s17
      // Predicated region
      $region45: #{tpu_custom_call.1} parent=5 // pred_check
        %p321 = pneg %p320
      $region46: #{tpu_custom_call.1} parent=5 // pred_check_branch
        %323 = sbr.rel (%p321) target = $region48
      $region47: #{tpu_custom_call.1} parent=5 // pred_region
        %s324 = ssub.s32 %s17, 2
        // Predicated region
        $region49: #{tpu_custom_call.1} parent=47 // pred_check
          %p325 = pneg %p122
        $region50: #{tpu_custom_call.1} parent=47 // pred_check_branch
          %327 = sbr.rel (%p325) target = $region52
        $region51: #{tpu_custom_call.1} parent=47 // pred_region
          %s328 = sand.u32 %s107, 1
          %s329 = scalar_lea.sflag [#allocation4], %s328
          %s330 = sand.u32 %s107, 1
          %s331 = scalar_lea.vmem [#allocation7], %s330
          %332 = dma.done %s329, 16
        $region52: #{tpu_custom_call.1} parent=47 // pred_fallthru
          _
      $region48: #{tpu_custom_call.1} parent=5 // pred_fallthru
        _
    $region6: #{tpu_custom_call.1} parent=1 // loop_footer
      %s21 = sadd.s32 1, %s17
    $region7: #{tpu_custom_call.1} parent=1 // loop_footer_branch
      %16 = sbr.rel target = $region3
    $region8: #{tpu_custom_call.1} parent=1 // loop_exit
      _
    %333 = vsyncpa [#allocation3], 1
    %s334 = scalar_lea.sflag [#allocation3], 1
    %335 = vsyncpa %s334, 1
    %336 = vsyncpa [#allocation6], 1
    %s337 = scalar_lea.sflag [#allocation6], 1
    %338 = vsyncpa %s337, 1
    %339 = vsyncpa [#allocation4], 1
    %s340 = scalar_lea.sflag [#allocation4], 1
    %341 = vsyncpa %s340, 1

</llo_original>
